<compile_context>
chip_gen: v5e
topology: v5e:2x2
jax: 0.10.0
libtpu: 0.0.40
codegen_flags: <defaults>
</compile_context>

<pallas_src>
import jax
import jax.numpy as jnp
from jax.experimental import pallas as pl
from jax.experimental.pallas import tpu as pltpu

# --- module hyperparameters (mushrooms.csv has 23 columns) ---
INPUT_SIZE = 23
HIDDEN_SIZE = 100
OUTPUT_SIZE = INPUT_SIZE

# lane-padded (multiple of 128) compute widths
HIDDEN_PAD = 128
OUTPUT_PAD = 128

_SUBLANE = 8  # f32 sublane quantum (x and out are streamed as f32)


def _round_up(n: int, m: int) -> int:
    return ((n + m - 1) // m) * m


def autoencoder_kernel(x_ref, w1_ref, b1_ref, w2_ref, b2_ref, o_ref):
    # x arrives as f32; cast to bf16 here (hidden under DMA / VPU slack).
    xb = x_ref[...].astype(jnp.bfloat16)
    # encoder: Linear (bf16 MXU, f32 accumulate) + bias + ReLU in f32
    h = jnp.dot(xb, w1_ref[...], preferred_element_type=jnp.float32)
    h = jnp.maximum(h + b1_ref[...], 0.0)
    # decoder: Linear + Sigmoid (exp and approx reciprocal both land on the EUP)
    y = jnp.dot(h.astype(jnp.bfloat16), w2_ref[...],
                preferred_element_type=jnp.float32)
    y = y + b2_ref[...]
    sig = pl.reciprocal(1.0 + jnp.exp(-y), approx=True)
    # store only the output width the caller asked for (23 unpadded, or 128 dense)
    o_ref[...] = sig[:, : o_ref.shape[-1]].astype(o_ref.dtype)


def prepare_params(w1, b1, w2, b2):
    """One-time prep: transpose to (in, out), zero-pad lane dims, cast to bf16.

    Inputs use PyTorch nn.Linear layout: w1 (HIDDEN, INPUT), b1 (HIDDEN,),
    w2 (OUTPUT, HIDDEN), b2 (OUTPUT,).  Zero padding keeps the math exact:
    padded hidden units are relu(0 + 0) = 0 and hit all-zero rows of W2.
    """
    w1_t = jnp.zeros((INPUT_SIZE, HIDDEN_PAD), jnp.bfloat16)
    w1_t = w1_t.at[:, :HIDDEN_SIZE].set(w1.T.astype(jnp.bfloat16))
    b1_p = jnp.zeros((1, HIDDEN_PAD), jnp.float32)
    b1_p = b1_p.at[0, :HIDDEN_SIZE].set(b1.astype(jnp.float32))

    w2_t = jnp.zeros((HIDDEN_PAD, OUTPUT_PAD), jnp.bfloat16)
    w2_t = w2_t.at[:HIDDEN_SIZE, :OUTPUT_SIZE].set(w2.T.astype(jnp.bfloat16))
    b2_p = jnp.zeros((1, OUTPUT_PAD), jnp.float32)
    b2_p = b2_p.at[0, :OUTPUT_SIZE].set(b2.astype(jnp.float32))
    return w1_t, b1_p, w2_t, b2_p


def _tile_plan(B: int, tile_b_max: int):
    # Cap tile so the "parallel" batch axis has >= 2 tiles when B is big enough
    # (lets v7x shard across its two TensorCores); then even out the tile size
    # so b_pad == B whenever B is a multiple of 8 (no jnp.pad copy).
    tile_req = max(_SUBLANE, min(tile_b_max, _round_up(pl.cdiv(B, 2), _SUBLANE)))
    n_tiles = pl.cdiv(B, tile_req)
    tile_b = _round_up(pl.cdiv(B, n_tiles), _SUBLANE)
    return tile_b, n_tiles, n_tiles * tile_b


def autoencoder_forward(x, w1_t, b1_p, w2_t, b2_p, *, tile_b=2048,
                        lane_dense_out=False):
    """x: (B, INPUT_SIZE) float32; params from prepare_params(). Returns (B, 23) f32."""
    B, d_in = x.shape
    assert d_in == INPUT_SIZE
    x = x.astype(jnp.float32)

    tile_b, n_tiles, b_pad = _tile_plan(B, tile_b)
    if b_pad != B:
        x = jnp.pad(x, ((0, b_pad - B), (0, 0)))

    if lane_dense_out:
        # v5e-friendly fallback: lane-dense store (no masked vst), bf16 halves writes.
        out_shape = jax.ShapeDtypeStruct((b_pad, OUTPUT_PAD), jnp.bfloat16)
        out_spec = pl.BlockSpec((tile_b, OUTPUT_PAD), lambda i: (i, 0))
        out_row_bytes = OUTPUT_PAD * 2
    else:
        # Default: write the unpadded 23-wide f32 output directly (no slice pass).
        out_shape = jax.ShapeDtypeStruct((b_pad, OUTPUT_SIZE), jnp.float32)
        out_spec = pl.BlockSpec((tile_b, OUTPUT_SIZE), lambda i: (i, 0))
        out_row_bytes = OUTPUT_SIZE * 4

    weight_bytes = (INPUT_SIZE * HIDDEN_PAD + HIDDEN_PAD * OUTPUT_PAD) * 2 \
        + (HIDDEN_PAD + OUTPUT_PAD) * 4
    cost = pl.CostEstimate(
        flops=2 * b_pad * (INPUT_SIZE * HIDDEN_PAD + HIDDEN_PAD * OUTPUT_PAD),
        transcendentals=2 * b_pad * OUTPUT_PAD,  # exp + approx reciprocal
        bytes_accessed=b_pad * (INPUT_SIZE * 4 + out_row_bytes) + weight_bytes,
    )

    out = pl.pallas_call(
        autoencoder_kernel,
        out_shape=out_shape,
        grid=(n_tiles,),
        in_specs=[
            pl.BlockSpec((tile_b, INPUT_SIZE), lambda i: (i, 0)),      # streamed x (f32)
            pl.BlockSpec((INPUT_SIZE, HIDDEN_PAD), lambda i: (0, 0)),  # resident W1
            pl.BlockSpec((1, HIDDEN_PAD), lambda i: (0, 0)),           # resident b1
            pl.BlockSpec((HIDDEN_PAD, OUTPUT_PAD), lambda i: (0, 0)),  # resident W2
            pl.BlockSpec((1, OUTPUT_PAD), lambda i: (0, 0)),           # resident b2
        ],
        out_specs=out_spec,
        compiler_params=pltpu.CompilerParams(
            dimension_semantics=("parallel",),
            # vmem_limit_bytes left at default: true footprint is a few MiB even
            # at tile_b=2048 (lane-padded x/out tiles + resident weights).
        ),
        cost_estimate=cost,
    )(x, w1_t, b1_p, w2_t, b2_p)

    if lane_dense_out:
        out = out[:, :OUTPUT_SIZE].astype(jnp.float32)
    return out[:B] if b_pad != B else out


def reference_forward(x, w1, b1, w2, b2):
    h = jnp.maximum(x @ w1.T + b1, 0.0)
    return jax.nn.sigmoid(h @ w2.T + b2)


if __name__ == "__main__":
    key = jax.random.PRNGKey(0)
    k_x, k_w1, k_b1, k_w2, k_b2 = jax.random.split(key, 5)

    batch = 48  # small; multiple of 8 -> no pad, and exercises a 2-tile grid
    x = jax.random.normal(k_x, (batch, INPUT_SIZE), dtype=jnp.float32)

    # Deterministic PyTorch-style init: U(-1/sqrt(fan_in), 1/sqrt(fan_in))
    lim1 = 1.0 / (INPUT_SIZE ** 0.5)
    lim2 = 1.0 / (HIDDEN_SIZE ** 0.5)
    w1 = jax.random.uniform(k_w1, (HIDDEN_SIZE, INPUT_SIZE), jnp.float32, -lim1, lim1)
    b1 = jax.random.uniform(k_b1, (HIDDEN_SIZE,), jnp.float32, -lim1, lim1)
    w2 = jax.random.uniform(k_w2, (OUTPUT_SIZE, HIDDEN_SIZE), jnp.float32, -lim2, lim2)
    b2 = jax.random.uniform(k_b2, (OUTPUT_SIZE,), jnp.float32, -lim2, lim2)

    params = prepare_params(w1, b1, w2, b2)   # hoisted one-time weight prep
    ref = reference_forward(x, w1, b1, w2, b2)

    # Default path: unpadded (B, 23) f32 output written directly by the kernel.
    out = jax.block_until_ready(autoencoder_forward(x, *params))
    assert out.shape == (batch, OUTPUT_SIZE) and out.dtype == jnp.float32
    # bf16 inputs/weights with f32 accumulation + approx reciprocal vs f32
    # reference: tolerance comfortably above bf16 rounding.
    assert jnp.allclose(out, ref, atol=2e-2, rtol=0.0), \
        float(jnp.max(jnp.abs(out - ref)))

    # v5e-friendly lane-dense bf16 output variant (same math, padded store path).
    out_dense = jax.block_until_ready(
        autoencoder_forward(x, *params, lane_dense_out=True))
    assert out_dense.shape == (batch, OUTPUT_SIZE)
    assert jnp.allclose(out_dense, ref, atol=2e-2, rtol=0.0), \
        float(jnp.max(jnp.abs(out_dense - ref)))

    print("KERNEL_OK")
</pallas_src>

<mosaic_0001>
module attributes {stable_mosaic.version = 11 : i64} {
  func.func @autoencoder_kernel(%arg0: i32, %arg1: memref<24x23xf32, #tpu.memory_space<vmem>>, %arg2: memref<23x128xbf16, #tpu.memory_space<vmem>>, %arg3: memref<1x128xf32, #tpu.memory_space<vmem>>, %arg4: memref<128x128xbf16, #tpu.memory_space<vmem>>, %arg5: memref<1x128xf32, #tpu.memory_space<vmem>>, %arg6: memref<24x23xf32, #tpu.memory_space<vmem>>) attributes {dimension_semantics = [#tpu.dimension_semantics<parallel>], iteration_bounds = array<i64: 2>, scalar_prefetch = 0 : i64, scratch_operands = 0 : i64, tpu.core_type = #tpu.core_type<tc>, window_params = [{transform_indices = @transform_0, window_bounds = array<i64: 24, 23>}, {pipeline_mode = #tpu.pipeline_mode<synchronous>, transform_indices = @transform_1, window_bounds = array<i64: 23, 128>}, {pipeline_mode = #tpu.pipeline_mode<synchronous>, transform_indices = @transform_2, window_bounds = array<i64: 1, 128>}, {pipeline_mode = #tpu.pipeline_mode<synchronous>, transform_indices = @transform_3, window_bounds = array<i64: 128, 128>}, {pipeline_mode = #tpu.pipeline_mode<synchronous>, transform_indices = @transform_4, window_bounds = array<i64: 1, 128>}, {transform_indices = @transform_5, window_bounds = array<i64: 24, 23>}]} {
    %c0 = arith.constant 0 : index
    %c0_0 = arith.constant 0 : index
    %0 = vector.load %arg1[%c0, %c0_0] : memref<24x23xf32, #tpu.memory_space<vmem>>, vector<24x23xf32>
    %1 = arith.truncf %0 : vector<24x23xf32> to vector<24x23xbf16>
    %c0_1 = arith.constant 0 : index
    %c0_2 = arith.constant 0 : index
    %2 = vector.load %arg2[%c0_1, %c0_2] : memref<23x128xbf16, #tpu.memory_space<vmem>>, vector<23x128xbf16>
    %cst = arith.constant dense<0.000000e+00> : vector<24x128xf32>
    %3 = tpu.matmul %1, %2, %cst {dimension_numbers = #tpu.dot_dimension_numbers<[1], [0], [0], [1], [0, 0, 1, 1], [], []>} : vector<24x23xbf16>, vector<23x128xbf16>, vector<24x128xf32> -> vector<24x128xf32>
    %c0_3 = arith.constant 0 : index
    %c0_4 = arith.constant 0 : index
    %4 = vector.load %arg3[%c0_3, %c0_4] : memref<1x128xf32, #tpu.memory_space<vmem>>, vector<1x128xf32>
    %5 = vector.broadcast %4 : vector<1x128xf32> to vector<24x128xf32>
    %6 = arith.addf %3, %5 : vector<24x128xf32>
    %cst_5 = arith.constant 0.000000e+00 : f32
    %7 = vector.broadcast %cst_5 : f32 to vector<24x128xf32>
    %8 = arith.maximumf %6, %7 : vector<24x128xf32>
    %9 = arith.truncf %8 : vector<24x128xf32> to vector<24x128xbf16>
    %c0_6 = arith.constant 0 : index
    %c0_7 = arith.constant 0 : index
    %10 = vector.load %arg4[%c0_6, %c0_7] : memref<128x128xbf16, #tpu.memory_space<vmem>>, vector<128x128xbf16>
    %cst_8 = arith.constant dense<0.000000e+00> : vector<24x128xf32>
    %11 = tpu.matmul %9, %10, %cst_8 {dimension_numbers = #tpu.dot_dimension_numbers<[1], [0], [0], [1], [0, 0, 1, 1], [], []>} : vector<24x128xbf16>, vector<128x128xbf16>, vector<24x128xf32> -> vector<24x128xf32>
    %c0_9 = arith.constant 0 : index
    %c0_10 = arith.constant 0 : index
    %12 = vector.load %arg5[%c0_9, %c0_10] : memref<1x128xf32, #tpu.memory_space<vmem>>, vector<1x128xf32>
    %13 = vector.broadcast %12 : vector<1x128xf32> to vector<24x128xf32>
    %14 = arith.addf %11, %13 : vector<24x128xf32>
    %cst_11 = arith.constant 0.000000e+00 : f32
    %15 = vector.broadcast %cst_11 : f32 to vector<24x128xf32>
    %16 = arith.subf %15, %14 : vector<24x128xf32>
    %17 = math.exp %16 : vector<24x128xf32>
    %cst_12 = arith.constant 1.000000e+00 : f32
    %18 = vector.broadcast %cst_12 : f32 to vector<24x128xf32>
    %19 = arith.addf %18, %17 : vector<24x128xf32>
    %20 = tpu.reciprocal %19 {approx = true} : vector<24x128xf32> -> vector<24x128xf32>
    %21 = vector.extract_strided_slice %20 {offsets = [0, 0], sizes = [24, 23], strides = [1, 1]} : vector<24x128xf32> to vector<24x23xf32>
    %c0_13 = arith.constant 0 : index
    %c0_14 = arith.constant 0 : index
    %22 = vector.load %arg6[%c0_13, %c0_14] : memref<24x23xf32, #tpu.memory_space<vmem>>, vector<24x23xf32>
    tpu.vector_store %arg6[%c0_13, %c0_14], %21 {strides = array<i32>} : memref<24x23xf32, #tpu.memory_space<vmem>>, vector<24x23xf32>,
    return
  }
  func.func @transform_0(%arg0: i32) -> (i32, i32) {
    %c0_i32 = arith.constant 0 : i32
    %c0_i32_0 = arith.constant 0 : i32
    return %arg0, %c0_i32 : i32, i32
  }
  func.func @transform_1(%arg0: i32) -> (i32, i32) {
    %c0_i32 = arith.constant 0 : i32
    %c0_i32_0 = arith.constant 0 : i32
    %c0_i32_1 = arith.constant 0 : i32
    return %c0_i32, %c0_i32_0 : i32, i32
  }
  func.func @transform_2(%arg0: i32) -> (i32, i32) {
    %c0_i32 = arith.constant 0 : i32
    %c0_i32_0 = arith.constant 0 : i32
    %c0_i32_1 = arith.constant 0 : i32
    return %c0_i32, %c0_i32_0 : i32, i32
  }
  func.func @transform_3(%arg0: i32) -> (i32, i32) {
    %c0_i32 = arith.constant 0 : i32
    %c0_i32_0 = arith.constant 0 : i32
    %c0_i32_1 = arith.constant 0 : i32
    return %c0_i32, %c0_i32_0 : i32, i32
  }
  func.func @transform_4(%arg0: i32) -> (i32, i32) {
    %c0_i32 = arith.constant 0 : i32
    %c0_i32_0 = arith.constant 0 : i32
    %c0_i32_1 = arith.constant 0 : i32
    return %c0_i32, %c0_i32_0 : i32, i32
  }
  func.func @transform_5(%arg0: i32) -> (i32, i32) {
    %c0_i32 = arith.constant 0 : i32
    %c0_i32_0 = arith.constant 0 : i32
    return %arg0, %c0_i32 : i32, i32
  }
}

</mosaic_0001>

<llo_original>
// kernel: tpu_custom_call.1
$region0: #{tpu_custom_call.1}
  #allocation0 [shape = 'u32[]', space=smem, size = 0x4, offset = 0x4, fixed_abs, tag = 'smem constant byte address 0x4 - core index']
  #allocation1 [shape = 'u32[72,128]{1,0:T(1,128)}', space=vmem, size = 0x9000, scoped, tag = 'internal scratch']
  %s0 = inlined_call_operand.vmem [shape: f32[48,23], index: 0, kind: input, shape index: {}]
  %s1 = inlined_call_operand.hbm [shape: bf16[23,128], index: 1, kind: input, shape index: {}]
  %s2 = inlined_call_operand.vmem [shape: f32[1,128], index: 2, kind: input, shape index: {}]
  %s3 = inlined_call_operand.vmem [shape: bf16[128,128], index: 3, kind: input, shape index: {}]
  %s4 = inlined_call_operand.vmem [shape: f32[1,128], index: 4, kind: input, shape index: {}]
  %s5 = inlined_call_operand.vmem [shape: f32[48,23], index: 5, kind: output, shape index: {}]
  %s6 = sld [smem:[#allocation0]]
  $region57: #{tpu_custom_call.1} parent=0
    _
  %s8 = ssub.s32 1, %s6
  %s9 = scalar_select 0, %s8, %s6
  $region1: #{tpu_custom_call.1} parent=0
    #allocation2 [shape = 'u8[6144]{0}', space=vmem, size = 0x1800, scoped, tag = 'input window, operand 1, single buffered']
    #allocation3 [shape = 's32[2]{0}', space=sflag, size = 0x8, scoped, tag = 'scoped memory for tpu_custom_call.1']
    %10 = vsyncpa [#allocation3], 0
    loop: start=0, step=1, limit=4
    $region2: #{tpu_custom_call.1} parent=1 // loop_pre_header
      _
    $region3: #{tpu_custom_call.1} parent=1 // loop_header
      %s12 = sphi 0, %s16
      %p13 = scmp.ge.s32.totalorder %s12, 4
      %s22 = sphi 0, %s24
      %s25 = sphi 0, %s22
      %s26 = sphi 0, %s25
      %s42 = sphi 0, %s26
      %s46 = sphi 0, %s46
      %s48 = sphi 0, %s46
      %s49 = sphi 0, %s48
      %s63 = sphi 0, %s49
      %s67 = sphi 0, %s67
      %s69 = sphi 0, %s67
      %s70 = sphi 0, %s69
      %s84 = sphi 0, %s70
      %s88 = sphi 0, %s88
      %s90 = sphi 0, %s88
      %s91 = sphi 0, %s90
      %s105 = sphi 0, %s91
      %s109 = sphi 0, %s109
      %s111 = sphi 0, %s109
      %s112 = sphi 0, %s111
      %s126 = sphi 0, %s112
      %s132 = sphi 0, %s134
      %s135 = sphi 0, %s132
      %s136 = sphi 0, %s135
      %s152 = sphi 0, %s136
    $region4: #{tpu_custom_call.1} parent=1 // loop_header_branch
      %15 = sbr.rel (%p13) target = $region8
    $region5: #{tpu_custom_call.1} parent=1 // loop_body
      %s17 = ssub.s32 %s12, 1
      %s18 = ssub.s32 %s12, 2
      %s19 = sadd.s32 %s12, 1
      %s20 = ssub.s32 %s12, %s19
      %p21 = scmp.eq.s32.totalorder %s20, 0
      %s23 = sadd.s32 %s22, 1
      %s24 = scalar_select %p21, %s22, %s23
      %p27 = pneg %p21
      %p28 = scmp.eq.s32.totalorder %s12, 1
      %p29 = por %p27, %p28
      %p30 = scmp.ne.s32.totalorder %s22, %s25
      %p31 = scmp.eq.s32.totalorder %s12, 0
      %p32 = por %p30, %p31
      %p33 = scmp.ne.s32.totalorder %s22, %s25
      %p34 = scmp.eq.s32.totalorder %s17, 1
      %p35 = por %p33, %p34
      %p36 = scmp.ne.s32.totalorder %s25, %s26
      %p37 = scmp.eq.s32.totalorder %s17, 0
      %p38 = por %p36, %p37
      %p39 = scmp.ne.s32.totalorder %s25, %s26
      %p40 = scmp.eq.s32.totalorder %s18, 1
      %p41 = por %p39, %p40
      %p43 = scmp.ne.s32.totalorder %s26, %s42
      %p44 = scmp.eq.s32.totalorder %s18, 0
      %p45 = por %p43, %p44
      %s47 = sadd.s32 %s46, 1
      %p50 = scmp.eq.s32.totalorder %s12, 1
      %p51 = scmp.ne.s32.totalorder %s46, %s48
      %p52 = scmp.eq.s32.totalorder %s12, 0
      %p53 = por %p51, %p52
      %p54 = scmp.ne.s32.totalorder %s46, %s48
      %p55 = scmp.eq.s32.totalorder %s17, 1
      %p56 = por %p54, %p55
      %p57 = scmp.ne.s32.totalorder %s48, %s49
      %p58 = scmp.eq.s32.totalorder %s17, 0
      %p59 = por %p57, %p58
      %p60 = scmp.ne.s32.totalorder %s48, %s49
      %p61 = scmp.eq.s32.totalorder %s18, 1
      %p62 = por %p60, %p61
      %p64 = scmp.ne.s32.totalorder %s49, %s63
      %p65 = scmp.eq.s32.totalorder %s18, 0
      %p66 = por %p64, %p65
      %s68 = sadd.s32 %s67, 1
      %p71 = scmp.eq.s32.totalorder %s12, 1
      %p72 = scmp.ne.s32.totalorder %s67, %s69
      %p73 = scmp.eq.s32.totalorder %s12, 0
      %p74 = por %p72, %p73
      %p75 = scmp.ne.s32.totalorder %s67, %s69
      %p76 = scmp.eq.s32.totalorder %s17, 1
      %p77 = por %p75, %p76
      %p78 = scmp.ne.s32.totalorder %s69, %s70
      %p79 = scmp.eq.s32.totalorder %s17, 0
      %p80 = por %p78, %p79
      %p81 = scmp.ne.s32.totalorder %s69, %s70
      %p82 = scmp.eq.s32.totalorder %s18, 1
      %p83 = por %p81, %p82
      %p85 = scmp.ne.s32.totalorder %s70, %s84
      %p86 = scmp.eq.s32.totalorder %s18, 0
      %p87 = por %p85, %p86
      %s89 = sadd.s32 %s88, 1
      %p92 = scmp.eq.s32.totalorder %s12, 1
      %p93 = scmp.ne.s32.totalorder %s88, %s90
      %p94 = scmp.eq.s32.totalorder %s12, 0
      %p95 = por %p93, %p94
      %p96 = scmp.ne.s32.totalorder %s88, %s90
      %p97 = scmp.eq.s32.totalorder %s17, 1
      %p98 = por %p96, %p97
      %p99 = scmp.ne.s32.totalorder %s90, %s91
      %p100 = scmp.eq.s32.totalorder %s17, 0
      %p101 = por %p99, %p100
      %p102 = scmp.ne.s32.totalorder %s90, %s91
      %p103 = scmp.eq.s32.totalorder %s18, 1
      %p104 = por %p102, %p103
      %p106 = scmp.ne.s32.totalorder %s91, %s105
      %p107 = scmp.eq.s32.totalorder %s18, 0
      %p108 = por %p106, %p107
      %s110 = sadd.s32 %s109, 1
      %p113 = scmp.eq.s32.totalorder %s12, 1
      %p114 = scmp.ne.s32.totalorder %s109, %s111
      %p115 = scmp.eq.s32.totalorder %s12, 0
      %p116 = por %p114, %p115
      %p117 = scmp.ne.s32.totalorder %s109, %s111
      %p118 = scmp.eq.s32.totalorder %s17, 1
      %p119 = por %p117, %p118
      %p120 = scmp.ne.s32.totalorder %s111, %s112
      %p121 = scmp.eq.s32.totalorder %s17, 0
      %p122 = por %p120, %p121
      %p123 = scmp.ne.s32.totalorder %s111, %s112
      %p124 = scmp.eq.s32.totalorder %s18, 1
      %p125 = por %p123, %p124
      %p127 = scmp.ne.s32.totalorder %s112, %s126
      %p128 = scmp.eq.s32.totalorder %s18, 0
      %p129 = por %p127, %p128
      %s130 = ssub.s32 %s12, %s19
      %p131 = scmp.eq.s32.totalorder %s130, 0
      %s133 = sadd.s32 %s132, 1
      %s134 = scalar_select %p131, %s132, %s133
      %p137 = pneg %p131
      %p138 = scmp.eq.s32.totalorder %s12, 1
      %p139 = por %p137, %p138
      %p140 = scmp.ne.s32.totalorder %s132, %s135
      %p141 = scmp.eq.s32.totalorder %s12, 0
      %p142 = por %p140, %p141
      %p143 = scmp.ne.s32.totalorder %s132, %s135
      %p144 = scmp.eq.s32.totalorder %s17, 1
      %p145 = por %p143, %p144
      %p146 = scmp.ne.s32.totalorder %s135, %s136
      %p147 = scmp.eq.s32.totalorder %s17, 0
      %p148 = por %p146, %p147
      %p149 = scmp.ne.s32.totalorder %s135, %s136
      %p150 = scmp.eq.s32.totalorder %s18, 1
      %p151 = por %p149, %p150
      %p153 = scmp.ne.s32.totalorder %s136, %s152
      %p154 = scmp.eq.s32.totalorder %s18, 0
      %p155 = por %p153, %p154
      %p156 = scmp.le.s32.totalorder 1, %s12
      %p157 = scmp.lt.s32.totalorder %s12, 3
      %p158 = pnand %p156, %p157
      %p159 = pneg %p158
      // Predicated region
      $region9: #{tpu_custom_call.1} parent=5 // pred_check
        _
      $region10: #{tpu_custom_call.1} parent=5 // pred_check_branch
        %161 = sbr.rel (%p158) target = $region12
      $region11: #{tpu_custom_call.1} parent=5 // pred_region
        %s162 = ssub.s32 %s12, 1
        // Predicated region
        $region13: #{tpu_custom_call.1} parent=11 // pred_check
          %p163 = pneg %p59
        $region14: #{tpu_custom_call.1} parent=11 // pred_check_branch
          %165 = sbr.rel (%p163) target = $region16
        $region15: #{tpu_custom_call.1} parent=11 // pred_region
          %167 = vsyncadd [#allocation3], 0
          %s168 = sshll.u32 %s1, 4
          %s169 = int_to_ptr.hbm [resolvable:$true] %s168
          %s170 = sshll.u32 [#allocation2], 4
          %s171 = int_to_ptr.vmem [resolvable:$true] %s170
          %176 = dma.hbm_to_vmem [thread:$0]  %s169, 192, %s171, [#allocation3], 64, 64, 4
        $region16: #{tpu_custom_call.1} parent=11 // pred_fallthru
          _
        // Predicated region
        $region17: #{tpu_custom_call.1} parent=11 // pred_check
          %p177 = pneg %p80
        $region18: #{tpu_custom_call.1} parent=11 // pred_check_branch
          %179 = sbr.rel (%p177) target = $region20
        $region19: #{tpu_custom_call.1} parent=11 // pred_region
          _
        $region20: #{tpu_custom_call.1} parent=11 // pred_fallthru
          _
        // Predicated region
        $region21: #{tpu_custom_call.1} parent=11 // pred_check
          %p180 = pneg %p101
        $region22: #{tpu_custom_call.1} parent=11 // pred_check_branch
          %182 = sbr.rel (%p180) target = $region24
        $region23: #{tpu_custom_call.1} parent=11 // pred_region
          _
        $region24: #{tpu_custom_call.1} parent=11 // pred_fallthru
          _
        // Predicated region
        $region25: #{tpu_custom_call.1} parent=11 // pred_check
          %p183 = pneg %p122
        $region26: #{tpu_custom_call.1} parent=11 // pred_check_branch
          %185 = sbr.rel (%p183) target = $region28
        $region27: #{tpu_custom_call.1} parent=11 // pred_region
          _
        $region28: #{tpu_custom_call.1} parent=11 // pred_fallthru
          _
      $region12: #{tpu_custom_call.1} parent=5 // pred_fallthru
        _
      %p186 = scmp.lt.s32.totalorder %s12, 2
      // Predicated region
      $region29: #{tpu_custom_call.1} parent=5 // pred_check
        %p187 = pneg %p186
      $region30: #{tpu_custom_call.1} parent=5 // pred_check_branch
        %189 = sbr.rel (%p187) target = $region32
      $region31: #{tpu_custom_call.1} parent=5 // pred_region
        // Predicated region
        $region33: #{tpu_custom_call.1} parent=31 // pred_check
          %p190 = pneg %p32
        $region34: #{tpu_custom_call.1} parent=31 // pred_check_branch
          %192 = sbr.rel (%p190) target = $region36
        $region35: #{tpu_custom_call.1} parent=31 // pred_region
          %s193 = smul.u32 3, %s12
          %p194 = scmp.lt.s32.totalorder %s193, 5
          %s195 = scalar_select %p194, %s193, 5
          %s196 = smul.addr %s195, 8
          %s197 = scalar_lea.vmem %s0, %s196
          %s198 = smul.u32 3, %s12
        $region36: #{tpu_custom_call.1} parent=31 // pred_fallthru
          _
      $region32: #{tpu_custom_call.1} parent=5 // pred_fallthru
        _
      %p199 = scmp.le.s32.totalorder 1, %s12
      %p200 = scmp.lt.s32.totalorder %s12, 3
      %p201 = pnand %p199, %p200
      %p202 = pneg %p201
      // Predicated region
      $region37: #{tpu_custom_call.1} parent=5 // pred_check
        _
      $region38: #{tpu_custom_call.1} parent=5 // pred_check_branch
        %204 = sbr.rel (%p201) target = $region40
      $region39: #{tpu_custom_call.1} parent=5 // pred_region
        %s205 = ssub.s32 %s12, 1
        // Predicated region
        $region41: #{tpu_custom_call.1} parent=39 // pred_check
          %p206 = pneg %p59
        $region42: #{tpu_custom_call.1} parent=39 // pred_check_branch
          %208 = sbr.rel (%p206) target = $region44
        $region43: #{tpu_custom_call.1} parent=39 // pred_region
          %210 = dma.done [#allocation3], 192
        $region44: #{tpu_custom_call.1} parent=39 // pred_fallthru
          _
        %s211 = smul.u32 3, %s17
        %p212 = scmp.lt.s32.totalorder %s211, 5
        %s213 = scalar_select %p212, %s211, 5
        %s214 = smul.addr %s213, 8
        %s215 = scalar_lea.vmem %s0, %s214
        %p216 = pneg %p38
        %p217 = pneg %p35
        %p218 = pneg %p59
        %p219 = pneg %p56
        %p220 = pneg %p80
        %p221 = pneg %p77
        %p222 = pneg %p101
        %p223 = pneg %p98
        %p224 = pneg %p122
        %p225 = pneg %p119
        %p226 = pneg %p148
        %p227 = pneg %p145
        %s228 = smul.u32 3, %s17
        %p229 = scmp.lt.s32.totalorder %s228, 5
        %s230 = scalar_select %p229, %s228, 5
        %s231 = smul.addr %s230, 8
        %s232 = scalar_lea.vmem %s5, %s231
        %s233 = smul.u32 3, %s17
        %p234 = scmp.lt.s32.totalorder %s233, 5
        %s235 = scalar_select %p234, %s233, 5
        %s236 = smul.addr %s235, 8
        %s237 = scalar_lea.vmem %s0, %s236
        %s238 = smul.u32 3, %s17
        %s239 = smul.u32 3, %s17
        %p240 = scmp.lt.s32.totalorder %s239, 5
        %s241 = scalar_select %p240, %s239, 5
        %s242 = smul.addr %s241, 8
        %s243 = scalar_lea.vmem %s5, %s242
        %s244 = smul.u32 3, %s17
        %v246 = vld [vmem:[%s237] sm:$0xff]
        %v247 = vld [vmem:[%s237 + $0x8] sm:$0xff]
        %v248 = vld [vmem:[%s237 + $0x10] sm:$0xff]
        %v249 = vpack.c.bf16 %v247, %v246
        %v250 = vpack.c.bf16 %v248, %v248
        %v251 = vld [vmem:[#allocation2] sm:$0xf]
        %v252 = vld [vmem:[#allocation2 + $0x4] sm:$0xf]
        %v253 = vld [vmem:[#allocation2 + $0x8] sm:$0xf]
        %v254 = vld [vmem:[%s2] sm:$0x1]
        %v256 = vperm.slane %v254, 0
        %v261 = vunpack.c.l.b16 %v251
        %v262 = vunpack.c.l.b16 %v252
        %v263 = vunpack.c.l.b16 %v253
        %v264 = vpack.c.b16 %v262, %v261
        %v265 = vpack.c.b16 %v263, %v263
        %vm267 = vcmask 187392
        %v269 = vsel %vm267, %v249, 0
        %v272 = vsel %vm267, %v250, 0
        %vm274 = vcmask 1042432
        %vm275 = vcmask 1043456
        %v276 = vsel %vm274, 4294967295, 65535
        %v277 = vsel %vm275, %v276, 0
        %v279 = vand.u32 %v265, %v277
        %281 = vmatpush.bf16.msra.mxu0 0
        %282 = vmatpush.bf16.msra.mxu0 0
        %283 = vmatpush.bf16.msra.mxu0 0
        %284 = vmatpush.bf16.msra.mxu0 0
        %285 = vmatpush.bf16.msra.mxu0 0
        %286 = vmatpush.bf16.msra.mxu0 0
        %287 = vmatpush.bf16.msra.mxu0 %v279
        %288 = vmatpush.bf16.msra.mxu0 %v264
        %289 = vmatmul.bf16.gmra.mxu0 %v269
        %v290 = vpop.f32.mrf.mxu0
        %v291 = vadd.f32 %v256, %v290
        %v292 = vpop.f32.mrf.mxu0
        %v293 = vadd.f32 %v256, %v292
        %294 = vmatmul.bf16.gmra.mxu0 %v272
        %v295 = vpop.f32.mrf.mxu0
        %v296 = vadd.f32 %v256, %v295
        %v297 = vpop.f32.mrf.mxu0
        %298 = vdwg.mxu0
        %v299 = vmax.f32 %v291, 0.0
        %v300 = vmax.f32 %v293, 0.0
        %v301 = vmax.f32 %v296, 0.0
        %v302 = vpack.c.bf16 %v300, %v299
        %v303 = vpack.c.bf16 %v301, %v301
        %v304 = vld [vmem:[%s3] sm:$0xf]
        %v305 = vld [vmem:[%s3 + $0x4] sm:$0xf]
        %v306 = vld [vmem:[%s3 + $0x8] sm:$0xf]
        %v307 = vld [vmem:[%s3 + $0xc] sm:$0xf]
        %v308 = vld [vmem:[%s3 + $0x10] sm:$0xf]
        %v309 = vld [vmem:[%s3 + $0x14] sm:$0xf]
        %v310 = vld [vmem:[%s3 + $0x18] sm:$0xf]
        %v311 = vld [vmem:[%s3 + $0x1c] sm:$0xf]
        %v312 = vld [vmem:[%s3 + $0x20] sm:$0xf]
        %v313 = vld [vmem:[%s3 + $0x24] sm:$0xf]
        %v314 = vld [vmem:[%s3 + $0x28] sm:$0xf]
        %v315 = vld [vmem:[%s3 + $0x2c] sm:$0xf]
        %v316 = vld [vmem:[%s3 + $0x30] sm:$0xf]
        %v317 = vld [vmem:[%s3 + $0x34] sm:$0xf]
        %v318 = vld [vmem:[%s3 + $0x38] sm:$0xf]
        %v319 = vld [vmem:[%s3 + $0x3c] sm:$0xf]
        %v320 = vld [vmem:[%s4] sm:$0x1]
        %v322 = vperm.slane %v320, 0
        %v340 = vunpack.c.l.b16 %v304
        %v341 = vunpack.c.l.b16 %v305
        %v342 = vunpack.c.l.b16 %v306
        %v343 = vunpack.c.l.b16 %v307
        %v344 = vunpack.c.l.b16 %v308
        %v345 = vunpack.c.l.b16 %v309
        %v346 = vunpack.c.l.b16 %v310
        %v347 = vunpack.c.l.b16 %v311
        %v348 = vunpack.c.l.b16 %v312
        %v349 = vunpack.c.l.b16 %v313
        %v350 = vunpack.c.l.b16 %v314
        %v351 = vunpack.c.l.b16 %v315
        %v352 = vunpack.c.l.b16 %v316
        %v353 = vunpack.c.l.b16 %v317
        %v354 = vunpack.c.l.b16 %v318
        %v355 = vunpack.c.l.b16 %v319
        %v356 = vpack.c.b16 %v341, %v340
        %v357 = vpack.c.b16 %v343, %v342
        %v358 = vpack.c.b16 %v345, %v344
        %v359 = vpack.c.b16 %v347, %v346
        %v360 = vpack.c.b16 %v349, %v348
        %v361 = vpack.c.b16 %v351, %v350
        %v362 = vpack.c.b16 %v353, %v352
        %v363 = vpack.c.b16 %v355, %v354
        %372 = vmatpush.bf16.msra.mxu0 %v363
        %373 = vmatpush.bf16.msra.mxu0 %v362
        %374 = vmatpush.bf16.msra.mxu0 %v361
        %375 = vmatpush.bf16.msra.mxu0 %v360
        %376 = vmatpush.bf16.msra.mxu0 %v359
        %377 = vmatpush.bf16.msra.mxu0 %v358
        %378 = vmatpush.bf16.msra.mxu0 %v357
        %379 = vmatpush.bf16.msra.mxu0 %v356
        %380 = vmatmul.bf16.gmra.mxu0 %v302
        %v381 = vpop.f32.mrf.mxu0
        %v382 = vadd.f32 %v322, %v381
        %v383 = vpop.f32.mrf.mxu0
        %v384 = vadd.f32 %v322, %v383
        %385 = vmatmul.bf16.gmra.mxu0 %v303
        %v386 = vpop.f32.mrf.mxu0
        %v387 = vadd.f32 %v322, %v386
        %v388 = vpop.f32.mrf.mxu0
        %389 = vdwg.mxu0
        %v390 = vsub.f32 0.0, %v382
        %v391 = vsub.f32 0.0, %v384
        %v392 = vsub.f32 0.0, %v387
        %v393 = vmul.f32 %v390, 1.442695
        %v394 = vpow.pop %v393
        %v395 = vmul.f32 %v391, 1.442695
        %v396 = vpow.pop %v395
        %v397 = vmul.f32 %v392, 1.442695
        %v398 = vpow.pop %v397
        %v399 = vadd.f32 %v394, 1.0
        %v400 = vadd.f32 %v396, 1.0
        %v401 = vadd.f32 %v398, 1.0
        %v402 = vrcp.pop %v399
        %v403 = vrcp.pop %v400
        %v404 = vrcp.pop %v401
        %405 = vst.msk [vmem:[%s243] sm:$0xff] %vm267, %v402
        %406 = vst.msk [vmem:[%s243 + $0x8] sm:$0xff] %vm267, %v403
        %407 = vst.msk [vmem:[%s243 + $0x10] sm:$0xff] %vm267, %v404
        %s408 = smul.u32 3, %s17
        %p409 = scmp.lt.s32.totalorder %s408, 5
        %s410 = scalar_select %p409, %s408, 5
        %s411 = smul.addr %s410, 8
        %s412 = scalar_lea.vmem %s5, %s411
        // Predicated region
        $region45: #{tpu_custom_call.1} parent=39 // pred_check
          %p413 = pneg %p145
        $region46: #{tpu_custom_call.1} parent=39 // pred_check_branch
          %415 = sbr.rel (%p413) target = $region48
        $region47: #{tpu_custom_call.1} parent=39 // pred_region
          %s416 = smul.u32 3, %s17
        $region48: #{tpu_custom_call.1} parent=39 // pred_fallthru
          _
      $region40: #{tpu_custom_call.1} parent=5 // pred_fallthru
        _
      %p417 = scmp.le.s32.totalorder 2, %s12
      // Predicated region
      $region49: #{tpu_custom_call.1} parent=5 // pred_check
        %p418 = pneg %p417
      $region50: #{tpu_custom_call.1} parent=5 // pred_check_branch
        %420 = sbr.rel (%p418) target = $region52
      $region51: #{tpu_custom_call.1} parent=5 // pred_region
        %s421 = ssub.s32 %s12, 2
        // Predicated region
        $region53: #{tpu_custom_call.1} parent=51 // pred_check
          %p422 = pneg %p151
        $region54: #{tpu_custom_call.1} parent=51 // pred_check_branch
          %424 = sbr.rel (%p422) target = $region56
        $region55: #{tpu_custom_call.1} parent=51 // pred_region
          %s425 = smul.u32 3, %s18
          %p426 = scmp.lt.s32.totalorder %s425, 5
          %s427 = scalar_select %p426, %s425, 5
          %s428 = smul.addr %s427, 8
          %s429 = scalar_lea.vmem %s5, %s428
        $region56: #{tpu_custom_call.1} parent=51 // pred_fallthru
          _
      $region52: #{tpu_custom_call.1} parent=5 // pred_fallthru
        _
    $region6: #{tpu_custom_call.1} parent=1 // loop_footer
      %s16 = sadd.s32 1, %s12
    $region7: #{tpu_custom_call.1} parent=1 // loop_footer_branch
      %11 = sbr.rel target = $region3
    $region8: #{tpu_custom_call.1} parent=1 // loop_exit
      _
    %430 = vsyncpa [#allocation3], 1
    %s431 = scalar_lea.sflag [#allocation3], 1
    %432 = vsyncpa %s431, 1

</llo_original>
